<compile_context>
chip_gen: v7x
topology: tpu7x:2x2x1
jax: 0.10.0
libtpu: 0.0.40
codegen_flags: <defaults>
</compile_context>

<pallas_src>
import jax
import jax.numpy as jnp
from jax import lax
from jax.experimental import pallas as pl
from jax.experimental.pallas import tpu as pltpu


def _merge_norm_reduce_kernel(u0_ref, u1_ref, w0_ref, w1_ref, b_ref, o_ref):
    # u0_ref / u1_ref : (TR, Wh, 2C)  even / odd image rows of each row pair;
    #                   lanes are [dx=0 channels | dx=1 channels].
    # w0_ref / w1_ref : (2C, 2Cout)   gamma-folded reduction-weight slices.
    # b_ref           : (1, 2Cout)    beta @ W^T  (f32).
    # o_ref           : (TR * Wh, 2Cout)
    tr, wh, c2 = u0_ref.shape
    inv_c4 = 1.0 / (2.0 * c2)          # 1 / (4 * d_model)
    eps = 1e-5

    u0 = u0_ref[...].astype(jnp.float32)
    u1 = u1_ref[...].astype(jnp.float32)

    # LayerNorm statistics over the full 4C channels of each merged token,
    # computed from the two dy halves without concatenating lanes.
    mean = (jnp.sum(u0, axis=-1, keepdims=True)
            + jnp.sum(u1, axis=-1, keepdims=True)) * inv_c4
    c0 = u0 - mean
    c1 = u1 - mean
    var = (jnp.sum(c0 * c0, axis=-1, keepdims=True)
           + jnp.sum(c1 * c1, axis=-1, keepdims=True)) * inv_c4
    rstd = lax.rsqrt(var + eps)

    # Normalize, flatten tokens, and run the (gamma-folded) reduction on the
    # MXU in the native input dtype with f32 accumulation.
    n0 = (c0 * rstd).reshape(tr * wh, c2).astype(w0_ref.dtype)
    n1 = (c1 * rstd).reshape(tr * wh, c2).astype(w1_ref.dtype)

    y = jnp.dot(n0, w0_ref[...], preferred_element_type=jnp.float32)
    y = y + jnp.dot(n1, w1_ref[...], preferred_element_type=jnp.float32)
    y = y + b_ref[...].astype(jnp.float32)          # folded beta contribution
    o_ref[...] = y.astype(o_ref.dtype)


def _choose_rows_per_tile(rows, wh, c, itemsize):
    """Largest divisor of `rows` whose tile fits an ~8 MiB working set and keeps
    the output block sublane-aligned (tile_tokens % 8 == 0) when grid > 1."""
    budget = 8 * 1024 * 1024
    # 2 input blocks (2C each) + 1 output block (2C), double-buffered.
    per_token = (2 * (2 * c) + 2 * c) * itemsize * 2
    max_tokens = max(1, budget // per_token)
    target = int(min(rows, max(1, max_tokens // max(wh, 1))))
    best = rows  # fallback: single block (block == full dim is always legal)
    for d in range(1, target + 1):
        if rows % d == 0 and (d * wh) % 8 == 0:
            best = d
    return best


def _norm_reduce_pallas(x4, w_dy0, w_dy1, bias, out_dtype):
    """x4: (B*Hh, 2, Wh, 2C) -> (B*Hh*Wh, 2Cout) fused gather+LN+reduction."""
    rows, two, wh, c2 = x4.shape
    assert two == 2
    c2_out = w_dy0.shape[1]
    tr = _choose_rows_per_tile(rows, wh, c2 // 2, jnp.dtype(x4.dtype).itemsize)
    grid = (rows // tr,)
    n = rows * wh

    return pl.pallas_call(
        _merge_norm_reduce_kernel,
        out_shape=jax.ShapeDtypeStruct((n, c2_out), out_dtype),
        grid=grid,
        in_specs=[
            # dy = 0 rows (quadrants x0 | x2 along lanes)
            pl.BlockSpec((tr, None, wh, c2), lambda i: (i, 0, 0, 0)),
            # dy = 1 rows (quadrants x1 | x3 along lanes)
            pl.BlockSpec((tr, None, wh, c2), lambda i: (i, 1, 0, 0)),
            pl.BlockSpec((c2, c2_out), lambda i: (0, 0)),   # resident weights
            pl.BlockSpec((c2, c2_out), lambda i: (0, 0)),
            pl.BlockSpec((1, c2_out), lambda i: (0, 0)),    # resident bias
        ],
        out_specs=pl.BlockSpec((tr * wh, c2_out), lambda i: (i, 0)),
        compiler_params=pltpu.CompilerParams(
            dimension_semantics=("parallel",)),
    )(x4, x4, w_dy0, w_dy1, bias)


def patch_merging_kai(x_tuple, params, input_resolution):
    """Mirror of PatchMerging_Kai.forward.

    x_tuple = (x, arbitrary_input, (H, W)) with x of shape (B, L, C).
    `arbitrary_input` must be a static Python bool.
    Returns (out, arbitrary_input, (H_out, W_out)).
    """
    x, arbitrary_input, hw = x_tuple
    if arbitrary_input:
        H, W = hw
    else:
        H, W = input_resolution

    B, L, C = x.shape
    assert L == H * W, "input feature has wrong size"

    x = x.reshape(B, H, W, C)
    # Odd-resolution trim (rare path) stays an XLA slice in the wrapper.
    if H % 2 != 0:
        x = x[:, :-1, :, :]
        H -= 1
    if W % 2 != 0:
        x = x[:, :, :-1, :]
        W -= 1
    Hh, Wh = H // 2, W // 2

    # Free row-major view: (B, 2*Hh, 2*Wh, C) -> (B*Hh, 2, Wh, 2C).
    # For a fixed dy, each merged token occupies lanes [dx=0 chans | dx=1 chans].
    x4 = x.reshape(B * Hh, 2, Wh, 2 * C)

    gamma = params["norm_gamma"].astype(jnp.float32).reshape(4 * C)
    beta = params["norm_beta"].astype(jnp.float32).reshape(4 * C)
    w_t = params["reduction_weight"].astype(jnp.float32).T        # (4C, 2Cout)
    c2_out = w_t.shape[1]

    # Fold the LayerNorm affine into the reduction weight / bias.
    w_folded = gamma[:, None] * w_t
    bias = (beta @ w_t).reshape(1, c2_out)                        # stays f32
    # torch concat order is [x0, x1, x2, x3] = [(dy0,dx0),(dy1,dx0),(dy0,dx1),(dy1,dx1)]
    w_dy0 = jnp.concatenate([w_folded[0:C], w_folded[2 * C:3 * C]], axis=0)
    w_dy1 = jnp.concatenate([w_folded[C:2 * C], w_folded[3 * C:4 * C]], axis=0)
    w_dy0 = w_dy0.astype(x.dtype)
    w_dy1 = w_dy1.astype(x.dtype)

    out = _norm_reduce_pallas(x4, w_dy0, w_dy1, bias, x.dtype)
    out = out.reshape(B, Hh * Wh, c2_out)
    return out, arbitrary_input, (Hh, Wh)


def _reference(x_tuple, params, input_resolution):
    """Pure-JAX reference mirroring the PyTorch module exactly."""
    x, arbitrary_input, hw = x_tuple
    H, W = hw if arbitrary_input else input_resolution
    B, L, C = x.shape
    x = x.reshape(B, H, W, C)
    if H % 2 != 0:
        x = x[:, :-1, :, :]
    if W % 2 != 0:
        x = x[:, :, :-1, :]
    x0 = x[:, 0::2, 0::2, :]
    x1 = x[:, 1::2, 0::2, :]
    x2 = x[:, 0::2, 1::2, :]
    x3 = x[:, 1::2, 1::2, :]
    x = jnp.concatenate([x0, x1, x2, x3], axis=-1)
    Ho, Wo = x.shape[1], x.shape[2]
    x = x.reshape(B, Ho * Wo, 4 * C).astype(jnp.float32)
    mean = jnp.mean(x, axis=-1, keepdims=True)
    var = jnp.mean((x - mean) ** 2, axis=-1, keepdims=True)
    xn = (x - mean) / jnp.sqrt(var + 1e-5)
    xn = xn * params["norm_gamma"].astype(jnp.float32) + params["norm_beta"].astype(jnp.float32)
    y = xn @ params["reduction_weight"].astype(jnp.float32).T
    return y, arbitrary_input, (Ho, Wo)


if __name__ == "__main__":
    key = jax.random.PRNGKey(0)
    B, H, W, C = 2, 16, 16, 64        # d_model=64 -> lane-dense 2C=128 output
    L = H * W

    k_x, k_w, k_g, k_b = jax.random.split(key, 4)
    x = jax.random.normal(k_x, (B, L, C), dtype=jnp.float32)

    params = {
        "reduction_weight": jax.random.normal(k_w, (2 * C, 4 * C), jnp.float32)
        * (1.0 / jnp.sqrt(4.0 * C)),
        "norm_gamma": 1.0 + 0.1 * jax.random.normal(k_g, (4 * C,), jnp.float32),
        "norm_beta": 0.1 * jax.random.normal(k_b, (4 * C,), jnp.float32),
    }

    # arbitrary_input=True path (H, W taken from the tuple)
    out, flag, (Ho, Wo) = patch_merging_kai((x, True, (H, W)), params, (H, W))
    out = jax.block_until_ready(out)
    ref, _, (Hr, Wr) = _reference((x, True, (H, W)), params, (H, W))
    assert out.shape == (B, (H // 2) * (W // 2), 2 * C), out.shape
    assert (Ho, Wo) == (Hr, Wr) == (H // 2, W // 2)
    err = float(jnp.max(jnp.abs(out.astype(jnp.float32) - ref)))
    assert err < 5e-4, err

    # arbitrary_input=False path (H, W taken from the module's input_resolution)
    out2, _, _ = patch_merging_kai((x, False, None), params, (H, W))
    out2 = jax.block_until_ready(out2)
    ref2, _, _ = _reference((x, False, None), params, (H, W))
    err2 = float(jnp.max(jnp.abs(out2.astype(jnp.float32) - ref2)))
    assert err2 < 5e-4, err2

    print("KERNEL_OK")
</pallas_src>

<mosaic_0001>
module attributes {stable_mosaic.version = 11 : i64} {
  func.func @_merge_norm_reduce_kernel(%arg0: i32, %arg1: memref<16x1x8x128xf32, #tpu.memory_space<vmem>>, %arg2: memref<16x1x8x128xf32, #tpu.memory_space<vmem>>, %arg3: memref<128x128xf32, #tpu.memory_space<vmem>>, %arg4: memref<128x128xf32, #tpu.memory_space<vmem>>, %arg5: memref<1x128xf32, #tpu.memory_space<vmem>>, %arg6: memref<128x128xf32, #tpu.memory_space<vmem>>) attributes {dimension_semantics = [#tpu.dimension_semantics<parallel>], iteration_bounds = array<i64: 1>, scalar_prefetch = 0 : i64, scratch_operands = 0 : i64, tpu.core_type = #tpu.core_type<tc>, window_params = [{transform_indices = @transform_0, window_bounds = array<i64: 16, 1, 8, 128>}, {transform_indices = @transform_1, window_bounds = array<i64: 16, 1, 8, 128>}, {pipeline_mode = #tpu.pipeline_mode<synchronous>, transform_indices = @transform_2, window_bounds = array<i64: 128, 128>}, {pipeline_mode = #tpu.pipeline_mode<synchronous>, transform_indices = @transform_3, window_bounds = array<i64: 128, 128>}, {pipeline_mode = #tpu.pipeline_mode<synchronous>, transform_indices = @transform_4, window_bounds = array<i64: 1, 128>}, {transform_indices = @transform_5, window_bounds = array<i64: 128, 128>}]} {
    %c0 = arith.constant 0 : index
    %c0_0 = arith.constant 0 : index
    %c0_1 = arith.constant 0 : index
    %c0_2 = arith.constant 0 : index
    %0 = vector.load %arg1[%c0, %c0_0, %c0_1, %c0_2] : memref<16x1x8x128xf32, #tpu.memory_space<vmem>>, vector<16x1x8x128xf32>
    %1 = vector.shape_cast %0 : vector<16x1x8x128xf32> to vector<16x8x128xf32>
    %c0_3 = arith.constant 0 : index
    %c0_4 = arith.constant 0 : index
    %c0_5 = arith.constant 0 : index
    %c0_6 = arith.constant 0 : index
    %2 = vector.load %arg2[%c0_3, %c0_4, %c0_5, %c0_6] : memref<16x1x8x128xf32, #tpu.memory_space<vmem>>, vector<16x1x8x128xf32>
    %3 = vector.shape_cast %2 : vector<16x1x8x128xf32> to vector<16x8x128xf32>
    %cst = arith.constant dense<0.000000e+00> : vector<16x8xf32>
    %4 = vector.multi_reduction <add>, %1, %cst [2] : vector<16x8x128xf32> to vector<16x8xf32>
    %5 = vector.shape_cast %4 : vector<16x8xf32> to vector<16x8x1xf32>
    %cst_7 = arith.constant dense<0.000000e+00> : vector<16x8xf32>
    %6 = vector.multi_reduction <add>, %3, %cst_7 [2] : vector<16x8x128xf32> to vector<16x8xf32>
    %7 = vector.shape_cast %6 : vector<16x8xf32> to vector<16x8x1xf32>
    %8 = arith.addf %5, %7 : vector<16x8x1xf32>
    %cst_8 = arith.constant 3.906250e-03 : f32
    %9 = vector.broadcast %cst_8 : f32 to vector<16x8x1xf32>
    %10 = arith.mulf %8, %9 : vector<16x8x1xf32>
    %11 = vector.broadcast %10 : vector<16x8x1xf32> to vector<16x8x128xf32>
    %12 = arith.subf %1, %11 : vector<16x8x128xf32>
    %13 = vector.broadcast %10 : vector<16x8x1xf32> to vector<16x8x128xf32>
    %14 = arith.subf %3, %13 : vector<16x8x128xf32>
    %15 = arith.mulf %12, %12 : vector<16x8x128xf32>
    %cst_9 = arith.constant dense<0.000000e+00> : vector<16x8xf32>
    %16 = vector.multi_reduction <add>, %15, %cst_9 [2] : vector<16x8x128xf32> to vector<16x8xf32>
    %17 = vector.shape_cast %16 : vector<16x8xf32> to vector<16x8x1xf32>
    %18 = arith.mulf %14, %14 : vector<16x8x128xf32>
    %cst_10 = arith.constant dense<0.000000e+00> : vector<16x8xf32>
    %19 = vector.multi_reduction <add>, %18, %cst_10 [2] : vector<16x8x128xf32> to vector<16x8xf32>
    %20 = vector.shape_cast %19 : vector<16x8xf32> to vector<16x8x1xf32>
    %21 = arith.addf %17, %20 : vector<16x8x1xf32>
    %cst_11 = arith.constant 3.906250e-03 : f32
    %22 = vector.broadcast %cst_11 : f32 to vector<16x8x1xf32>
    %23 = arith.mulf %21, %22 : vector<16x8x1xf32>
    %cst_12 = arith.constant 9.99999974E-6 : f32
    %24 = vector.broadcast %cst_12 : f32 to vector<16x8x1xf32>
    %25 = arith.addf %23, %24 : vector<16x8x1xf32>
    %26 = math.rsqrt %25 : vector<16x8x1xf32>
    %27 = vector.broadcast %26 : vector<16x8x1xf32> to vector<16x8x128xf32>
    %28 = arith.mulf %12, %27 : vector<16x8x128xf32>
    %29 = vector.shape_cast %28 : vector<16x8x128xf32> to vector<128x128xf32>
    %30 = vector.broadcast %26 : vector<16x8x1xf32> to vector<16x8x128xf32>
    %31 = arith.mulf %14, %30 : vector<16x8x128xf32>
    %32 = vector.shape_cast %31 : vector<16x8x128xf32> to vector<128x128xf32>
    %c0_13 = arith.constant 0 : index
    %c0_14 = arith.constant 0 : index
    %33 = vector.load %arg3[%c0_13, %c0_14] : memref<128x128xf32, #tpu.memory_space<vmem>>, vector<128x128xf32>
    %cst_15 = arith.constant dense<0.000000e+00> : vector<128x128xf32>
    %34 = tpu.matmul %29, %33, %cst_15 {dimension_numbers = #tpu.dot_dimension_numbers<[1], [0], [0], [1], [0, 0, 1, 1], [], []>} : vector<128x128xf32>, vector<128x128xf32>, vector<128x128xf32> -> vector<128x128xf32>
    %c0_16 = arith.constant 0 : index
    %c0_17 = arith.constant 0 : index
    %35 = vector.load %arg4[%c0_16, %c0_17] : memref<128x128xf32, #tpu.memory_space<vmem>>, vector<128x128xf32>
    %cst_18 = arith.constant dense<0.000000e+00> : vector<128x128xf32>
    %36 = tpu.matmul %32, %35, %cst_18 {dimension_numbers = #tpu.dot_dimension_numbers<[1], [0], [0], [1], [0, 0, 1, 1], [], []>} : vector<128x128xf32>, vector<128x128xf32>, vector<128x128xf32> -> vector<128x128xf32>
    %37 = arith.addf %34, %36 : vector<128x128xf32>
    %c0_19 = arith.constant 0 : index
    %c0_20 = arith.constant 0 : index
    %38 = vector.load %arg5[%c0_19, %c0_20] : memref<1x128xf32, #tpu.memory_space<vmem>>, vector<1x128xf32>
    %39 = vector.broadcast %38 : vector<1x128xf32> to vector<128x128xf32>
    %40 = arith.addf %37, %39 : vector<128x128xf32>
    %c0_21 = arith.constant 0 : index
    %c0_22 = arith.constant 0 : index
    %41 = vector.load %arg6[%c0_21, %c0_22] : memref<128x128xf32, #tpu.memory_space<vmem>>, vector<128x128xf32>
    tpu.vector_store %arg6[%c0_21, %c0_22], %40 {strides = array<i32>} : memref<128x128xf32, #tpu.memory_space<vmem>>, vector<128x128xf32>,
    return
  }
  func.func @transform_0(%arg0: i32) -> (i32, i32, i32, i32) {
    %c0_i32 = arith.constant 0 : i32
    %c0_i32_0 = arith.constant 0 : i32
    %c0_i32_1 = arith.constant 0 : i32
    %c0_i32_2 = arith.constant 0 : i32
    return %arg0, %c0_i32, %c0_i32_0, %c0_i32_1 : i32, i32, i32, i32
  }
  func.func @transform_1(%arg0: i32) -> (i32, i32, i32, i32) {
    %c1_i32 = arith.constant 1 : i32
    %c0_i32 = arith.constant 0 : i32
    %c0_i32_0 = arith.constant 0 : i32
    %c0_i32_1 = arith.constant 0 : i32
    return %arg0, %c1_i32, %c0_i32, %c0_i32_0 : i32, i32, i32, i32
  }
  func.func @transform_2(%arg0: i32) -> (i32, i32) {
    %c0_i32 = arith.constant 0 : i32
    %c0_i32_0 = arith.constant 0 : i32
    %c0_i32_1 = arith.constant 0 : i32
    return %c0_i32, %c0_i32_0 : i32, i32
  }
  func.func @transform_3(%arg0: i32) -> (i32, i32) {
    %c0_i32 = arith.constant 0 : i32
    %c0_i32_0 = arith.constant 0 : i32
    %c0_i32_1 = arith.constant 0 : i32
    return %c0_i32, %c0_i32_0 : i32, i32
  }
  func.func @transform_4(%arg0: i32) -> (i32, i32) {
    %c0_i32 = arith.constant 0 : i32
    %c0_i32_0 = arith.constant 0 : i32
    %c0_i32_1 = arith.constant 0 : i32
    return %c0_i32, %c0_i32_0 : i32, i32
  }
  func.func @transform_5(%arg0: i32) -> (i32, i32) {
    %c0_i32 = arith.constant 0 : i32
    %c0_i32_0 = arith.constant 0 : i32
    return %arg0, %c0_i32 : i32, i32
  }
}

</mosaic_0001>

<llo_original>
// kernel: tpu_custom_call.1
$region0: #{tpu_custom_call.1}
  #allocation0 [shape = 'u32[]', space=smem, size = 0x4, offset = 0x4, fixed_abs, tag = 'smem constant byte address 0x4 - core index']
  #allocation1 [shape = 'u32[144,128]{1,0:T(1,128)}', space=vmem, size = 0x12000, scoped, tag = 'internal scratch']
  %s0 = inlined_call_operand.hbm [shape: f32[16,2,8,128], index: 0, kind: input, shape index: {}]
  %s1 = inlined_call_operand.hbm [shape: f32[16,2,8,128], index: 1, kind: input, shape index: {}]
  %s2 = inlined_call_operand.hbm [shape: f32[128,128], index: 2, kind: input, shape index: {}]
  %s3 = inlined_call_operand.hbm [shape: f32[128,128], index: 3, kind: input, shape index: {}]
  %s4 = inlined_call_operand.vmem [shape: f32[1,128], index: 4, kind: input, shape index: {}]
  %s5 = inlined_call_operand.hbm [shape: f32[128,128], index: 5, kind: output, shape index: {}]
  %s6 = sld [smem:[#allocation0]]
  $region46: #{tpu_custom_call.1} parent=0
    _
  %s8 = ssub.s32 1, %s6
  %s9 = scalar_select 0, %s8, %s6
  $region1: #{tpu_custom_call.1} parent=0
    #allocation2 [shape = 'u8[65536]{0}', space=vmem, size = 0x10000, scoped, tag = 'input window, operand 0, single buffered']
    #allocation3 [shape = 's32[1]{0}', space=sflag, size = 0x4, scoped, tag = 'scoped memory for tpu_custom_call.1']
    #allocation4 [shape = 's32[1]{0}', space=sflag, size = 0x4, scoped, tag = 'scoped memory for tpu_custom_call.1']
    #allocation5 [shape = 'u8[65536]{0}', space=vmem, size = 0x10000, scoped, tag = 'input window, operand 1, single buffered']
    #allocation6 [shape = 's32[1]{0}', space=sflag, size = 0x4, scoped, tag = 'scoped memory for tpu_custom_call.1']
    #allocation7 [shape = 'u8[65536]{0}', space=vmem, size = 0x10000, scoped, tag = 'input window, operand 2, single buffered']
    #allocation8 [shape = 'u8[65536]{0}', space=vmem, size = 0x10000, scoped, tag = 'input window, operand 3, single buffered']
    #allocation9 [shape = 's32[1]{0}', space=sflag, size = 0x4, scoped, tag = 'scoped memory for tpu_custom_call.1']
    #allocation10 [shape = 'u8[65536]{0}', space=vmem, size = 0x10000, scoped, tag = 'output window, operand 0, single buffered']
    %10 = vsyncpa [#allocation3], 0
    %11 = vsyncpa [#allocation6], 0
    %12 = vsyncpa [#allocation9], 0
    %13 = vsyncpa [#allocation4], 0
    // Predicated region
    $region2: #{tpu_custom_call.1} parent=1 // pred_check
      _
    $region3: #{tpu_custom_call.1} parent=1 // pred_check_branch
      %15 = sbr.rel (0) target = $region5
    $region4: #{tpu_custom_call.1} parent=1 // pred_region
      %s17 = ssub.s32 2048, 2048
      %18 = vsyncadd [#allocation3], %s17
      %s19 = sshll.u32 [#allocation2], 4
      %s20 = int_to_ptr.vmem [resolvable:$true] %s19
      %25 = dma.hbm_to_vmem [thread:$0]  %s0, 2048, %s20, [#allocation3], 256, 128, 8
    $region5: #{tpu_custom_call.1} parent=1 // pred_fallthru
      _
    // Predicated region
    $region6: #{tpu_custom_call.1} parent=1 // pred_check
      _
    $region7: #{tpu_custom_call.1} parent=1 // pred_check_branch
      %27 = sbr.rel (0) target = $region9
    $region8: #{tpu_custom_call.1} parent=1 // pred_region
      %s29 = ssub.s32 2048, 2048
      %30 = vsyncadd [#allocation6], %s29
      %s31 = scalar_lea.hbm %s1, 128
      %s32 = sshll.u32 [#allocation5], 4
      %s33 = int_to_ptr.vmem [resolvable:$true] %s32
      %38 = dma.hbm_to_vmem [thread:$0]  %s31, 2048, %s33, [#allocation6], 256, 128, 8
    $region9: #{tpu_custom_call.1} parent=1 // pred_fallthru
      _
    // Predicated region
    $region10: #{tpu_custom_call.1} parent=1 // pred_check
      _
    $region11: #{tpu_custom_call.1} parent=1 // pred_check_branch
      %40 = sbr.rel (0) target = $region13
    $region12: #{tpu_custom_call.1} parent=1 // pred_region
      %s42 = ssub.s32 2048, 2048
      %43 = vsyncadd [#allocation6], %s42
      %s44 = sshll.u32 [#allocation7], 4
      %s45 = int_to_ptr.vmem [resolvable:$true] %s44
      %50 = dma.hbm_to_vmem [thread:$0]  %s2, 2048, %s45, [#allocation6], 128, 128, 8
    $region13: #{tpu_custom_call.1} parent=1 // pred_fallthru
      _
    // Predicated region
    $region14: #{tpu_custom_call.1} parent=1 // pred_check
      _
    $region15: #{tpu_custom_call.1} parent=1 // pred_check_branch
      %52 = sbr.rel (0) target = $region17
    $region16: #{tpu_custom_call.1} parent=1 // pred_region
      %s54 = ssub.s32 2048, 2048
      %55 = vsyncadd [#allocation9], %s54
      %s56 = sshll.u32 [#allocation8], 4
      %s57 = int_to_ptr.vmem [resolvable:$true] %s56
      %62 = dma.hbm_to_vmem [thread:$0]  %s3, 2048, %s57, [#allocation9], 128, 128, 8
    $region17: #{tpu_custom_call.1} parent=1 // pred_fallthru
      _
    // Predicated region
    $region18: #{tpu_custom_call.1} parent=1 // pred_check
      _
    $region19: #{tpu_custom_call.1} parent=1 // pred_check_branch
      %64 = sbr.rel (0) target = $region21
    $region20: #{tpu_custom_call.1} parent=1 // pred_region
      _
    $region21: #{tpu_custom_call.1} parent=1 // pred_fallthru
      _
    // Predicated region
    $region22: #{tpu_custom_call.1} parent=1 // pred_check
      _
    $region23: #{tpu_custom_call.1} parent=1 // pred_check_branch
      %66 = sbr.rel (0) target = $region25
    $region24: #{tpu_custom_call.1} parent=1 // pred_region
      %67 = dma.done [#allocation3], 2048
    $region25: #{tpu_custom_call.1} parent=1 // pred_fallthru
      _
    // Predicated region
    $region26: #{tpu_custom_call.1} parent=1 // pred_check
      _
    $region27: #{tpu_custom_call.1} parent=1 // pred_check_branch
      %69 = sbr.rel (0) target = $region29
    $region28: #{tpu_custom_call.1} parent=1 // pred_region
      %70 = dma.done [#allocation6], 2048
    $region29: #{tpu_custom_call.1} parent=1 // pred_fallthru
      _
    // Predicated region
    $region30: #{tpu_custom_call.1} parent=1 // pred_check
      _
    $region31: #{tpu_custom_call.1} parent=1 // pred_check_branch
      %72 = sbr.rel (0) target = $region33
    $region32: #{tpu_custom_call.1} parent=1 // pred_region
      %73 = dma.done [#allocation6], 2048
    $region33: #{tpu_custom_call.1} parent=1 // pred_fallthru
      _
    // Predicated region
    $region34: #{tpu_custom_call.1} parent=1 // pred_check
      _
    $region35: #{tpu_custom_call.1} parent=1 // pred_check_branch
      %75 = sbr.rel (0) target = $region37
    $region36: #{tpu_custom_call.1} parent=1 // pred_region
      %76 = dma.done [#allocation9], 2048
    $region37: #{tpu_custom_call.1} parent=1 // pred_fallthru
      _
    %v77 = vld [vmem:[#allocation2] sm:$0xff]
    %v78 = vld [vmem:[#allocation2 + $0x8] sm:$0xff]
    %v79 = vld [vmem:[#allocation2 + $0x10] sm:$0xff]
    %v80 = vld [vmem:[#allocation2 + $0x18] sm:$0xff]
    %v81 = vld [vmem:[#allocation2 + $0x20] sm:$0xff]
    %v82 = vld [vmem:[#allocation2 + $0x28] sm:$0xff]
    %v83 = vld [vmem:[#allocation2 + $0x30] sm:$0xff]
    %v84 = vld [vmem:[#allocation2 + $0x38] sm:$0xff]
    %v85 = vld [vmem:[#allocation2 + $0x40] sm:$0xff]
    %v86 = vld [vmem:[#allocation2 + $0x48] sm:$0xff]
    %v87 = vld [vmem:[#allocation2 + $0x50] sm:$0xff]
    %v88 = vld [vmem:[#allocation2 + $0x58] sm:$0xff]
    %v89 = vld [vmem:[#allocation2 + $0x60] sm:$0xff]
    %v90 = vld [vmem:[#allocation2 + $0x68] sm:$0xff]
    %v91 = vld [vmem:[#allocation2 + $0x70] sm:$0xff]
    %v92 = vld [vmem:[#allocation2 + $0x78] sm:$0xff]
    %v93 = vld [vmem:[#allocation5] sm:$0xff]
    %v94 = vld [vmem:[#allocation5 + $0x8] sm:$0xff]
    %v95 = vld [vmem:[#allocation5 + $0x10] sm:$0xff]
    %v96 = vld [vmem:[#allocation5 + $0x18] sm:$0xff]
    %v97 = vld [vmem:[#allocation5 + $0x20] sm:$0xff]
    %v98 = vld [vmem:[#allocation5 + $0x28] sm:$0xff]
    %v99 = vld [vmem:[#allocation5 + $0x30] sm:$0xff]
    %v100 = vld [vmem:[#allocation5 + $0x38] sm:$0xff]
    %v101 = vld [vmem:[#allocation5 + $0x40] sm:$0xff]
    %v102 = vld [vmem:[#allocation5 + $0x48] sm:$0xff]
    %v103 = vld [vmem:[#allocation5 + $0x50] sm:$0xff]
    %v104 = vld [vmem:[#allocation5 + $0x58] sm:$0xff]
    %v105 = vld [vmem:[#allocation5 + $0x60] sm:$0xff]
    %v106 = vld [vmem:[#allocation5 + $0x68] sm:$0xff]
    %v107 = vld [vmem:[#allocation5 + $0x70] sm:$0xff]
    %v108 = vld [vmem:[#allocation5 + $0x78] sm:$0xff]
    %109 = vadd.xlane.f32.xlu0 %v77
    %v110 = vpop.xlane.xlu0 %109
    %111 = vadd.xlane.f32.xlu0 %v78
    %v112 = vpop.xlane.xlu0 %111
    %113 = vadd.xlane.f32.xlu0 %v79
    %v114 = vpop.xlane.xlu0 %113
    %115 = vadd.xlane.f32.xlu0 %v80
    %v116 = vpop.xlane.xlu0 %115
    %117 = vadd.xlane.f32.xlu0 %v81
    %v118 = vpop.xlane.xlu0 %117
    %119 = vadd.xlane.f32.xlu0 %v82
    %v120 = vpop.xlane.xlu0 %119
    %121 = vadd.xlane.f32.xlu0 %v83
    %v122 = vpop.xlane.xlu0 %121
    %123 = vadd.xlane.f32.xlu0 %v84
    %v124 = vpop.xlane.xlu0 %123
    %125 = vadd.xlane.f32.xlu0 %v85
    %v126 = vpop.xlane.xlu0 %125
    %127 = vadd.xlane.f32.xlu0 %v86
    %v128 = vpop.xlane.xlu0 %127
    %129 = vadd.xlane.f32.xlu0 %v87
    %v130 = vpop.xlane.xlu0 %129
    %131 = vadd.xlane.f32.xlu0 %v88
    %v132 = vpop.xlane.xlu0 %131
    %133 = vadd.xlane.f32.xlu0 %v89
    %v134 = vpop.xlane.xlu0 %133
    %135 = vadd.xlane.f32.xlu0 %v90
    %v136 = vpop.xlane.xlu0 %135
    %137 = vadd.xlane.f32.xlu0 %v91
    %v138 = vpop.xlane.xlu0 %137
    %139 = vadd.xlane.f32.xlu0 %v92
    %v140 = vpop.xlane.xlu0 %139
    %141 = vadd.xlane.f32.xlu0 %v93
    %v142 = vpop.xlane.xlu0 %141
    %143 = vadd.xlane.f32.xlu0 %v94
    %v144 = vpop.xlane.xlu0 %143
    %145 = vadd.xlane.f32.xlu0 %v95
    %v146 = vpop.xlane.xlu0 %145
    %147 = vadd.xlane.f32.xlu0 %v96
    %v148 = vpop.xlane.xlu0 %147
    %149 = vadd.xlane.f32.xlu0 %v97
    %v150 = vpop.xlane.xlu0 %149
    %151 = vadd.xlane.f32.xlu0 %v98
    %v152 = vpop.xlane.xlu0 %151
    %153 = vadd.xlane.f32.xlu0 %v99
    %v154 = vpop.xlane.xlu0 %153
    %155 = vadd.xlane.f32.xlu0 %v100
    %v156 = vpop.xlane.xlu0 %155
    %157 = vadd.xlane.f32.xlu0 %v101
    %v158 = vpop.xlane.xlu0 %157
    %159 = vadd.xlane.f32.xlu0 %v102
    %v160 = vpop.xlane.xlu0 %159
    %161 = vadd.xlane.f32.xlu0 %v103
    %v162 = vpop.xlane.xlu0 %161
    %163 = vadd.xlane.f32.xlu0 %v104
    %v164 = vpop.xlane.xlu0 %163
    %165 = vadd.xlane.f32.xlu0 %v105
    %v166 = vpop.xlane.xlu0 %165
    %167 = vadd.xlane.f32.xlu0 %v106
    %v168 = vpop.xlane.xlu0 %167
    %169 = vadd.xlane.f32.xlu0 %v107
    %v170 = vpop.xlane.xlu0 %169
    %171 = vadd.xlane.f32.xlu0 %v108
    %v172 = vpop.xlane.xlu0 %171
    %v173 = vadd.f32 %v110, %v142
    %v174 = vadd.f32 %v112, %v144
    %v175 = vadd.f32 %v114, %v146
    %v176 = vadd.f32 %v116, %v148
    %v177 = vadd.f32 %v118, %v150
    %v178 = vadd.f32 %v120, %v152
    %v179 = vadd.f32 %v122, %v154
    %v180 = vadd.f32 %v124, %v156
    %v181 = vadd.f32 %v126, %v158
    %v182 = vadd.f32 %v128, %v160
    %v183 = vadd.f32 %v130, %v162
    %v184 = vadd.f32 %v132, %v164
    %v185 = vadd.f32 %v134, %v166
    %v186 = vadd.f32 %v136, %v168
    %v187 = vadd.f32 %v138, %v170
    %v188 = vadd.f32 %v140, %v172
    %v189 = vmul.f32 %v173, 0.00390625
    %v190 = vmul.f32 %v174, 0.00390625
    %v191 = vmul.f32 %v175, 0.00390625
    %v192 = vmul.f32 %v176, 0.00390625
    %v193 = vmul.f32 %v177, 0.00390625
    %v194 = vmul.f32 %v178, 0.00390625
    %v195 = vmul.f32 %v179, 0.00390625
    %v196 = vmul.f32 %v180, 0.00390625
    %v197 = vmul.f32 %v181, 0.00390625
    %v198 = vmul.f32 %v182, 0.00390625
    %v199 = vmul.f32 %v183, 0.00390625
    %v200 = vmul.f32 %v184, 0.00390625
    %v201 = vmul.f32 %v185, 0.00390625
    %v202 = vmul.f32 %v186, 0.00390625
    %v203 = vmul.f32 %v187, 0.00390625
    %v204 = vmul.f32 %v188, 0.00390625
    %v205 = vsub.f32 %v77, %v189
    %v206 = vsub.f32 %v78, %v190
    %v207 = vsub.f32 %v79, %v191
    %v208 = vsub.f32 %v80, %v192
    %v209 = vsub.f32 %v81, %v193
    %v210 = vsub.f32 %v82, %v194
    %v211 = vsub.f32 %v83, %v195
    %v212 = vsub.f32 %v84, %v196
    %v213 = vsub.f32 %v85, %v197
    %v214 = vsub.f32 %v86, %v198
    %v215 = vsub.f32 %v87, %v199
    %v216 = vsub.f32 %v88, %v200
    %v217 = vsub.f32 %v89, %v201
    %v218 = vsub.f32 %v90, %v202
    %v219 = vsub.f32 %v91, %v203
    %v220 = vsub.f32 %v92, %v204
    %v221 = vsub.f32 %v93, %v189
    %v222 = vsub.f32 %v94, %v190
    %v223 = vsub.f32 %v95, %v191
    %v224 = vsub.f32 %v96, %v192
    %v225 = vsub.f32 %v97, %v193
    %v226 = vsub.f32 %v98, %v194
    %v227 = vsub.f32 %v99, %v195
    %v228 = vsub.f32 %v100, %v196
    %v229 = vsub.f32 %v101, %v197
    %v230 = vsub.f32 %v102, %v198
    %v231 = vsub.f32 %v103, %v199
    %v232 = vsub.f32 %v104, %v200
    %v233 = vsub.f32 %v105, %v201
    %v234 = vsub.f32 %v106, %v202
    %v235 = vsub.f32 %v107, %v203
    %v236 = vsub.f32 %v108, %v204
    %v237 = vmul.f32 %v205, %v205
    %v238 = vmul.f32 %v206, %v206
    %v239 = vmul.f32 %v207, %v207
    %v240 = vmul.f32 %v208, %v208
    %v241 = vmul.f32 %v209, %v209
    %v242 = vmul.f32 %v210, %v210
    %v243 = vmul.f32 %v211, %v211
    %v244 = vmul.f32 %v212, %v212
    %v245 = vmul.f32 %v213, %v213
    %v246 = vmul.f32 %v214, %v214
    %v247 = vmul.f32 %v215, %v215
    %v248 = vmul.f32 %v216, %v216
    %v249 = vmul.f32 %v217, %v217
    %v250 = vmul.f32 %v218, %v218
    %v251 = vmul.f32 %v219, %v219
    %v252 = vmul.f32 %v220, %v220
    %253 = vadd.xlane.f32.xlu0 %v237
    %v254 = vpop.xlane.xlu0 %253
    %255 = vadd.xlane.f32.xlu0 %v238
    %v256 = vpop.xlane.xlu0 %255
    %257 = vadd.xlane.f32.xlu0 %v239
    %v258 = vpop.xlane.xlu0 %257
    %259 = vadd.xlane.f32.xlu0 %v240
    %v260 = vpop.xlane.xlu0 %259
    %261 = vadd.xlane.f32.xlu0 %v241
    %v262 = vpop.xlane.xlu0 %261
    %263 = vadd.xlane.f32.xlu0 %v242
    %v264 = vpop.xlane.xlu0 %263
    %265 = vadd.xlane.f32.xlu0 %v243
    %v266 = vpop.xlane.xlu0 %265
    %267 = vadd.xlane.f32.xlu0 %v244
    %v268 = vpop.xlane.xlu0 %267
    %269 = vadd.xlane.f32.xlu0 %v245
    %v270 = vpop.xlane.xlu0 %269
    %271 = vadd.xlane.f32.xlu0 %v246
    %v272 = vpop.xlane.xlu0 %271
    %273 = vadd.xlane.f32.xlu0 %v247
    %v274 = vpop.xlane.xlu0 %273
    %275 = vadd.xlane.f32.xlu0 %v248
    %v276 = vpop.xlane.xlu0 %275
    %277 = vadd.xlane.f32.xlu0 %v249
    %v278 = vpop.xlane.xlu0 %277
    %279 = vadd.xlane.f32.xlu0 %v250
    %v280 = vpop.xlane.xlu0 %279
    %281 = vadd.xlane.f32.xlu0 %v251
    %v282 = vpop.xlane.xlu0 %281
    %283 = vadd.xlane.f32.xlu0 %v252
    %v284 = vpop.xlane.xlu0 %283
    %v285 = vmul.f32 %v221, %v221
    %v286 = vmul.f32 %v222, %v222
    %v287 = vmul.f32 %v223, %v223
    %v288 = vmul.f32 %v224, %v224
    %v289 = vmul.f32 %v225, %v225
    %v290 = vmul.f32 %v226, %v226
    %v291 = vmul.f32 %v227, %v227
    %v292 = vmul.f32 %v228, %v228
    %v293 = vmul.f32 %v229, %v229
    %v294 = vmul.f32 %v230, %v230
    %v295 = vmul.f32 %v231, %v231
    %v296 = vmul.f32 %v232, %v232
    %v297 = vmul.f32 %v233, %v233
    %v298 = vmul.f32 %v234, %v234
    %v299 = vmul.f32 %v235, %v235
    %v300 = vmul.f32 %v236, %v236
    %301 = vadd.xlane.f32.xlu0 %v285
    %v302 = vpop.xlane.xlu0 %301
    %303 = vadd.xlane.f32.xlu0 %v286
    %v304 = vpop.xlane.xlu0 %303
    %305 = vadd.xlane.f32.xlu0 %v287
    %v306 = vpop.xlane.xlu0 %305
    %307 = vadd.xlane.f32.xlu0 %v288
    %v308 = vpop.xlane.xlu0 %307
    %309 = vadd.xlane.f32.xlu0 %v289
    %v310 = vpop.xlane.xlu0 %309
    %311 = vadd.xlane.f32.xlu0 %v290
    %v312 = vpop.xlane.xlu0 %311
    %313 = vadd.xlane.f32.xlu0 %v291
    %v314 = vpop.xlane.xlu0 %313
    %315 = vadd.xlane.f32.xlu0 %v292
    %v316 = vpop.xlane.xlu0 %315
    %317 = vadd.xlane.f32.xlu0 %v293
    %v318 = vpop.xlane.xlu0 %317
    %319 = vadd.xlane.f32.xlu0 %v294
    %v320 = vpop.xlane.xlu0 %319
    %321 = vadd.xlane.f32.xlu0 %v295
    %v322 = vpop.xlane.xlu0 %321
    %323 = vadd.xlane.f32.xlu0 %v296
    %v324 = vpop.xlane.xlu0 %323
    %325 = vadd.xlane.f32.xlu0 %v297
    %v326 = vpop.xlane.xlu0 %325
    %327 = vadd.xlane.f32.xlu0 %v298
    %v328 = vpop.xlane.xlu0 %327
    %329 = vadd.xlane.f32.xlu0 %v299
    %v330 = vpop.xlane.xlu0 %329
    %331 = vadd.xlane.f32.xlu0 %v300
    %v332 = vpop.xlane.xlu0 %331
    %v333 = vadd.f32 %v254, %v302
    %v334 = vadd.f32 %v256, %v304
    %v335 = vadd.f32 %v258, %v306
    %v336 = vadd.f32 %v260, %v308
    %v337 = vadd.f32 %v262, %v310
    %v338 = vadd.f32 %v264, %v312
    %v339 = vadd.f32 %v266, %v314
    %v340 = vadd.f32 %v268, %v316
    %v341 = vadd.f32 %v270, %v318
    %v342 = vadd.f32 %v272, %v320
    %v343 = vadd.f32 %v274, %v322
    %v344 = vadd.f32 %v276, %v324
    %v345 = vadd.f32 %v278, %v326
    %v346 = vadd.f32 %v280, %v328
    %v347 = vadd.f32 %v282, %v330
    %v348 = vadd.f32 %v284, %v332
    %v349 = vmul.f32 %v333, 0.00390625
    %v350 = vmul.f32 %v334, 0.00390625
    %v351 = vmul.f32 %v335, 0.00390625
    %v352 = vmul.f32 %v336, 0.00390625
    %v353 = vmul.f32 %v337, 0.00390625
    %v354 = vmul.f32 %v338, 0.00390625
    %v355 = vmul.f32 %v339, 0.00390625
    %v356 = vmul.f32 %v340, 0.00390625
    %v357 = vmul.f32 %v341, 0.00390625
    %v358 = vmul.f32 %v342, 0.00390625
    %v359 = vmul.f32 %v343, 0.00390625
    %v360 = vmul.f32 %v344, 0.00390625
    %v361 = vmul.f32 %v345, 0.00390625
    %v362 = vmul.f32 %v346, 0.00390625
    %v363 = vmul.f32 %v347, 0.00390625
    %v364 = vmul.f32 %v348, 0.00390625
    %v365 = vadd.f32 %v349, 1e-05
    %v366 = vadd.f32 %v350, 1e-05
    %v367 = vadd.f32 %v351, 1e-05
    %v368 = vadd.f32 %v352, 1e-05
    %v369 = vadd.f32 %v353, 1e-05
    %v370 = vadd.f32 %v354, 1e-05
    %v371 = vadd.f32 %v355, 1e-05
    %v372 = vadd.f32 %v356, 1e-05
    %v373 = vadd.f32 %v357, 1e-05
    %v374 = vadd.f32 %v358, 1e-05
    %v375 = vadd.f32 %v359, 1e-05
    %v376 = vadd.f32 %v360, 1e-05
    %v377 = vadd.f32 %v361, 1e-05
    %v378 = vadd.f32 %v362, 1e-05
    %v379 = vadd.f32 %v363, 1e-05
    %v380 = vadd.f32 %v364, 1e-05
    %v381 = vrsqrt.pop %v365
    %v382 = vrsqrt.pop %v366
    %v383 = vrsqrt.pop %v367
    %v384 = vrsqrt.pop %v368
    %v385 = vrsqrt.pop %v369
    %v386 = vrsqrt.pop %v370
    %v387 = vrsqrt.pop %v371
    %v388 = vrsqrt.pop %v372
    %v389 = vrsqrt.pop %v373
    %v390 = vrsqrt.pop %v374
    %v391 = vrsqrt.pop %v375
    %v392 = vrsqrt.pop %v376
    %v393 = vrsqrt.pop %v377
    %v394 = vrsqrt.pop %v378
    %v395 = vrsqrt.pop %v379
    %v396 = vrsqrt.pop %v380
    %v397 = vmul.f32 %v205, %v381
    %v398 = vmul.f32 %v206, %v382
    %v399 = vmul.f32 %v207, %v383
    %v400 = vmul.f32 %v208, %v384
    %v401 = vmul.f32 %v209, %v385
    %v402 = vmul.f32 %v210, %v386
    %v403 = vmul.f32 %v211, %v387
    %v404 = vmul.f32 %v212, %v388
    %v405 = vmul.f32 %v213, %v389
    %v406 = vmul.f32 %v214, %v390
    %v407 = vmul.f32 %v215, %v391
    %v408 = vmul.f32 %v216, %v392
    %v409 = vmul.f32 %v217, %v393
    %v410 = vmul.f32 %v218, %v394
    %v411 = vmul.f32 %v219, %v395
    %v412 = vmul.f32 %v220, %v396
    %v413 = vmul.f32 %v221, %v381
    %v414 = vmul.f32 %v222, %v382
    %v415 = vmul.f32 %v223, %v383
    %v416 = vmul.f32 %v224, %v384
    %v417 = vmul.f32 %v225, %v385
    %v418 = vmul.f32 %v226, %v386
    %v419 = vmul.f32 %v227, %v387
    %v420 = vmul.f32 %v228, %v388
    %v421 = vmul.f32 %v229, %v389
    %v422 = vmul.f32 %v230, %v390
    %v423 = vmul.f32 %v231, %v391
    %v424 = vmul.f32 %v232, %v392
    %v425 = vmul.f32 %v233, %v393
    %v426 = vmul.f32 %v234, %v394
    %v427 = vmul.f32 %v235, %v395
    %v428 = vmul.f32 %v236, %v396
    %v429 = vld [vmem:[#allocation7] sm:$0xff]
    %v430 = vld [vmem:[#allocation7 + $0x8] sm:$0xff]
    %v431 = vld [vmem:[#allocation7 + $0x10] sm:$0xff]
    %v432 = vld [vmem:[#allocation7 + $0x18] sm:$0xff]
    %v433 = vld [vmem:[#allocation7 + $0x20] sm:$0xff]
    %v434 = vld [vmem:[#allocation7 + $0x28] sm:$0xff]
    %v435 = vld [vmem:[#allocation7 + $0x30] sm:$0xff]
    %v436 = vld [vmem:[#allocation7 + $0x38] sm:$0xff]
    %v437 = vld [vmem:[#allocation7 + $0x40] sm:$0xff]
    %v438 = vld [vmem:[#allocation7 + $0x48] sm:$0xff]
    %v439 = vld [vmem:[#allocation7 + $0x50] sm:$0xff]
    %v440 = vld [vmem:[#allocation7 + $0x58] sm:$0xff]
    %v441 = vld [vmem:[#allocation7 + $0x60] sm:$0xff]
    %v442 = vld [vmem:[#allocation7 + $0x68] sm:$0xff]
    %v443 = vld [vmem:[#allocation7 + $0x70] sm:$0xff]
    %v444 = vld [vmem:[#allocation7 + $0x78] sm:$0xff]
    %v445 = vld [vmem:[#allocation8] sm:$0xff]
    %v446 = vld [vmem:[#allocation8 + $0x8] sm:$0xff]
    %v447 = vld [vmem:[#allocation8 + $0x10] sm:$0xff]
    %v448 = vld [vmem:[#allocation8 + $0x18] sm:$0xff]
    %v449 = vld [vmem:[#allocation8 + $0x20] sm:$0xff]
    %v450 = vld [vmem:[#allocation8 + $0x28] sm:$0xff]
    %v451 = vld [vmem:[#allocation8 + $0x30] sm:$0xff]
    %v452 = vld [vmem:[#allocation8 + $0x38] sm:$0xff]
    %v453 = vld [vmem:[#allocation8 + $0x40] sm:$0xff]
    %v454 = vld [vmem:[#allocation8 + $0x48] sm:$0xff]
    %v455 = vld [vmem:[#allocation8 + $0x50] sm:$0xff]
    %v456 = vld [vmem:[#allocation8 + $0x58] sm:$0xff]
    %v457 = vld [vmem:[#allocation8 + $0x60] sm:$0xff]
    %v458 = vld [vmem:[#allocation8 + $0x68] sm:$0xff]
    %v459 = vld [vmem:[#allocation8 + $0x70] sm:$0xff]
    %v460 = vld [vmem:[#allocation8 + $0x78] sm:$0xff]
    %461 = vmatprep.subr.mxu0 0.0
    %462 = vmatpush1.msra.mxu0 %v445
    %463 = vmatprep.subr.mxu0 0.0
    %464 = vmatpush1.msra.mxu0 %v446
    %465 = vmatprep.subr.mxu0 0.0
    %466 = vmatpush1.msra.mxu0 %v447
    %467 = vmatprep.subr.mxu0 0.0
    %468 = vmatpush1.msra.mxu0 %v448
    %469 = vmatprep.subr.mxu0 0.0
    %470 = vmatpush1.msra.mxu0 %v449
    %471 = vmatprep.subr.mxu0 0.0
    %472 = vmatpush1.msra.mxu0 %v450
    %473 = vmatprep.subr.mxu0 0.0
    %474 = vmatpush1.msra.mxu0 %v451
    %475 = vmatprep.subr.mxu0 0.0
    %476 = vmatpush1.msra.mxu0 %v452
    %477 = vmatprep.subr.mxu0 0.0
    %478 = vmatpush1.msra.mxu0 %v453
    %479 = vmatprep.subr.mxu0 0.0
    %480 = vmatpush1.msra.mxu0 %v454
    %481 = vmatprep.subr.mxu0 0.0
    %482 = vmatpush1.msra.mxu0 %v455
    %483 = vmatprep.subr.mxu0 0.0
    %484 = vmatpush1.msra.mxu0 %v456
    %485 = vmatprep.subr.mxu0 0.0
    %486 = vmatpush1.msra.mxu0 %v457
    %487 = vmatprep.subr.mxu0 0.0
    %488 = vmatpush1.msra.mxu0 %v458
    %489 = vmatprep.subr.mxu0 0.0
    %490 = vmatpush1.msra.mxu0 %v459
    %491 = vmatprep.subr.mxu0 0.0
    %492 = vmatpush1.msra.mxu0 %v460
    %493 = vmatprep.subr.mxu0 0.0
    %494 = vmatpush1.msra.mxu0 0.0
    %495 = vmatprep.subr.mxu0 0.0
    %496 = vmatpush1.msra.mxu0 0.0
    %497 = vmatprep.subr.mxu0 0.0
    %498 = vmatpush1.msra.mxu0 0.0
    %499 = vmatprep.subr.mxu0 0.0
    %500 = vmatpush1.msra.mxu0 0.0
    %501 = vmatprep.subr.mxu0 0.0
    %502 = vmatpush1.msra.mxu0 0.0
    %503 = vmatprep.subr.mxu0 0.0
    %504 = vmatpush1.msra.mxu0 0.0
    %505 = vmatprep.subr.mxu0 0.0
    %506 = vmatpush1.msra.mxu0 0.0
    %507 = vmatprep.subr.mxu0 0.0
    %508 = vmatpush1.msra.mxu0 0.0
    %509 = vmatprep.subr.mxu0 0.0
    %510 = vmatpush1.msra.mxu0 0.0
    %511 = vmatprep.subr.mxu0 0.0
    %512 = vmatpush1.msra.mxu0 0.0
    %513 = vmatprep.subr.mxu0 0.0
    %514 = vmatpush1.msra.mxu0 0.0
    %515 = vmatprep.subr.mxu0 0.0
    %516 = vmatpush1.msra.mxu0 0.0
    %517 = vmatprep.subr.mxu0 0.0
    %518 = vmatpush1.msra.mxu0 0.0
    %519 = vmatprep.subr.mxu0 0.0
    %520 = vmatpush1.msra.mxu0 0.0
    %521 = vmatprep.subr.mxu0 0.0
    %522 = vmatpush1.msra.mxu0 0.0
    %523 = vmatprep.subr.mxu0 0.0
    %524 = vmatpush1.msra.mxu0 0.0
    %525 = vmatprep.mubr.f32.mxu0 0.0
    %526 = vmatmul.mubr.f32.gmra.mrb[0].mxu0 %v413
    %v527 = vpop.f32.mrb[0].mxu0
    %v528 = vadd.f32 0.0, %v527
    %v529 = vpop.f32.mrb[0].mxu0
    %530 = vmatprep.mubr.f32.mxu0 0.0
    %531 = vmatmul.mubr.f32.gmra.mrb[0].mxu0 %v414
    %v532 = vpop.f32.mrb[0].mxu0
    %v533 = vadd.f32 0.0, %v532
    %v534 = vpop.f32.mrb[0].mxu0
    %535 = vmatprep.mubr.f32.mxu0 0.0
    %536 = vmatmul.mubr.f32.gmra.mrb[0].mxu0 %v415
    %v537 = vpop.f32.mrb[0].mxu0
    %v538 = vadd.f32 0.0, %v537
    %v539 = vpop.f32.mrb[0].mxu0
    %540 = vmatprep.mubr.f32.mxu0 0.0
    %541 = vmatmul.mubr.f32.gmra.mrb[0].mxu0 %v416
    %v542 = vpop.f32.mrb[0].mxu0
    %v543 = vadd.f32 0.0, %v542
    %v544 = vpop.f32.mrb[0].mxu0
    %545 = vmatprep.mubr.f32.mxu0 0.0
    %546 = vmatmul.mubr.f32.gmra.mrb[0].mxu0 %v417
    %v547 = vpop.f32.mrb[0].mxu0
    %v548 = vadd.f32 0.0, %v547
    %v549 = vpop.f32.mrb[0].mxu0
    %550 = vmatprep.mubr.f32.mxu0 0.0
    %551 = vmatmul.mubr.f32.gmra.mrb[0].mxu0 %v418
    %v552 = vpop.f32.mrb[0].mxu0
    %v553 = vadd.f32 0.0, %v552
    %v554 = vpop.f32.mrb[0].mxu0
    %555 = vmatprep.mubr.f32.mxu0 0.0
    %556 = vmatmul.mubr.f32.gmra.mrb[0].mxu0 %v419
    %v557 = vpop.f32.mrb[0].mxu0
    %v558 = vadd.f32 0.0, %v557
    %v559 = vpop.f32.mrb[0].mxu0
    %560 = vmatprep.mubr.f32.mxu0 0.0
    %561 = vmatmul.mubr.f32.gmra.mrb[0].mxu0 %v420
    %v562 = vpop.f32.mrb[0].mxu0
    %v563 = vadd.f32 0.0, %v562
    %v564 = vpop.f32.mrb[0].mxu0
    %565 = vmatprep.mubr.f32.mxu0 0.0
    %566 = vmatmul.mubr.f32.gmra.mrb[0].mxu0 %v421
    %v567 = vpop.f32.mrb[0].mxu0
    %v568 = vadd.f32 0.0, %v567
    %v569 = vpop.f32.mrb[0].mxu0
    %570 = vmatprep.mubr.f32.mxu0 0.0
    %571 = vmatmul.mubr.f32.gmra.mrb[0].mxu0 %v422
    %v572 = vpop.f32.mrb[0].mxu0
    %v573 = vadd.f32 0.0, %v572
    %v574 = vpop.f32.mrb[0].mxu0
    %575 = vmatprep.mubr.f32.mxu0 0.0
    %576 = vmatmul.mubr.f32.gmra.mrb[0].mxu0 %v423
    %v577 = vpop.f32.mrb[0].mxu0
    %v578 = vadd.f32 0.0, %v577
    %v579 = vpop.f32.mrb[0].mxu0
    %580 = vmatprep.mubr.f32.mxu0 0.0
    %581 = vmatmul.mubr.f32.gmra.mrb[0].mxu0 %v424
    %v582 = vpop.f32.mrb[0].mxu0
    %v583 = vadd.f32 0.0, %v582
    %v584 = vpop.f32.mrb[0].mxu0
    %585 = vmatprep.mubr.f32.mxu0 0.0
    %586 = vmatmul.mubr.f32.gmra.mrb[0].mxu0 %v425
    %v587 = vpop.f32.mrb[0].mxu0
    %v588 = vadd.f32 0.0, %v587
    %v589 = vpop.f32.mrb[0].mxu0
    %590 = vmatprep.mubr.f32.mxu0 0.0
    %591 = vmatmul.mubr.f32.gmra.mrb[0].mxu0 %v426
    %v592 = vpop.f32.mrb[0].mxu0
    %v593 = vadd.f32 0.0, %v592
    %v594 = vpop.f32.mrb[0].mxu0
    %595 = vmatprep.mubr.f32.mxu0 0.0
    %596 = vmatmul.mubr.f32.gmra.mrb[0].mxu0 %v427
    %v597 = vpop.f32.mrb[0].mxu0
    %v598 = vadd.f32 0.0, %v597
    %v599 = vpop.f32.mrb[0].mxu0
    %600 = vmatprep.mubr.f32.mxu0 0.0
    %601 = vmatmul.mubr.f32.gmra.mrb[0].mxu0 %v428
    %v602 = vpop.f32.mrb[0].mxu0
    %v603 = vadd.f32 0.0, %v602
    %v604 = vpop.f32.mrb[0].mxu0
    %605 = vdwg.mxu0
    %606 = vmatprep.subr.mxu0 0.0
    %607 = vmatpush1.msra.mxu0 %v429
    %608 = vmatprep.subr.mxu0 0.0
    %609 = vmatpush1.msra.mxu0 %v430
    %610 = vmatprep.subr.mxu0 0.0
    %611 = vmatpush1.msra.mxu0 %v431
    %612 = vmatprep.subr.mxu0 0.0
    %613 = vmatpush1.msra.mxu0 %v432
    %614 = vmatprep.subr.mxu0 0.0
    %615 = vmatpush1.msra.mxu0 %v433
    %616 = vmatprep.subr.mxu0 0.0
    %617 = vmatpush1.msra.mxu0 %v434
    %618 = vmatprep.subr.mxu0 0.0
    %619 = vmatpush1.msra.mxu0 %v435
    %620 = vmatprep.subr.mxu0 0.0
    %621 = vmatpush1.msra.mxu0 %v436
    %622 = vmatprep.subr.mxu0 0.0
    %623 = vmatpush1.msra.mxu0 %v437
    %624 = vmatprep.subr.mxu0 0.0
    %625 = vmatpush1.msra.mxu0 %v438
    %626 = vmatprep.subr.mxu0 0.0
    %627 = vmatpush1.msra.mxu0 %v439
    %628 = vmatprep.subr.mxu0 0.0
    %629 = vmatpush1.msra.mxu0 %v440
    %630 = vmatprep.subr.mxu0 0.0
    %631 = vmatpush1.msra.mxu0 %v441
    %632 = vmatprep.subr.mxu0 0.0
    %633 = vmatpush1.msra.mxu0 %v442
    %634 = vmatprep.subr.mxu0 0.0
    %635 = vmatpush1.msra.mxu0 %v443
    %636 = vmatprep.subr.mxu0 0.0
    %637 = vmatpush1.msra.mxu0 %v444
    %638 = vmatprep.subr.mxu0 0.0
    %639 = vmatpush1.msra.mxu0 0.0
    %640 = vmatprep.subr.mxu0 0.0
    %641 = vmatpush1.msra.mxu0 0.0
    %642 = vmatprep.subr.mxu0 0.0
    %643 = vmatpush1.msra.mxu0 0.0
    %644 = vmatprep.subr.mxu0 0.0
    %645 = vmatpush1.msra.mxu0 0.0
    %646 = vmatprep.subr.mxu0 0.0
    %647 = vmatpush1.msra.mxu0 0.0
    %648 = vmatprep.subr.mxu0 0.0
    %649 = vmatpush1.msra.mxu0 0.0
    %650 = vmatprep.subr.mxu0 0.0
    %651 = vmatpush1.msra.mxu0 0.0
    %652 = vmatprep.subr.mxu0 0.0
    %653 = vmatpush1.msra.mxu0 0.0
    %654 = vmatprep.subr.mxu0 0.0
    %655 = vmatpush1.msra.mxu0 0.0
    %656 = vmatprep.subr.mxu0 0.0
    %657 = vmatpush1.msra.mxu0 0.0
    %658 = vmatprep.subr.mxu0 0.0
    %659 = vmatpush1.msra.mxu0 0.0
    %660 = vmatprep.subr.mxu0 0.0
    %661 = vmatpush1.msra.mxu0 0.0
    %662 = vmatprep.subr.mxu0 0.0
    %663 = vmatpush1.msra.mxu0 0.0
    %664 = vmatprep.subr.mxu0 0.0
    %665 = vmatpush1.msra.mxu0 0.0
    %666 = vmatprep.subr.mxu0 0.0
    %667 = vmatpush1.msra.mxu0 0.0
    %668 = vmatprep.subr.mxu0 0.0
    %669 = vmatpush1.msra.mxu0 0.0
    %670 = vmatprep.mubr.f32.mxu0 0.0
    %671 = vmatmul.mubr.f32.gmra.mrb[0].mxu0 %v397
    %v672 = vpop.f32.mrb[0].mxu0
    %v673 = vadd.f32 %v528, %v672
    %v674 = vpop.f32.mrb[0].mxu0
    %675 = vmatprep.mubr.f32.mxu0 0.0
    %676 = vmatmul.mubr.f32.gmra.mrb[0].mxu0 %v398
    %v677 = vpop.f32.mrb[0].mxu0
    %v678 = vadd.f32 %v533, %v677
    %v679 = vpop.f32.mrb[0].mxu0
    %680 = vmatprep.mubr.f32.mxu0 0.0
    %681 = vmatmul.mubr.f32.gmra.mrb[0].mxu0 %v399
    %v682 = vpop.f32.mrb[0].mxu0
    %v683 = vadd.f32 %v538, %v682
    %v684 = vpop.f32.mrb[0].mxu0
    %685 = vmatprep.mubr.f32.mxu0 0.0
    %686 = vmatmul.mubr.f32.gmra.mrb[0].mxu0 %v400
    %v687 = vpop.f32.mrb[0].mxu0
    %v688 = vadd.f32 %v543, %v687
    %v689 = vpop.f32.mrb[0].mxu0
    %690 = vmatprep.mubr.f32.mxu0 0.0
    %691 = vmatmul.mubr.f32.gmra.mrb[0].mxu0 %v401
    %v692 = vpop.f32.mrb[0].mxu0
    %v693 = vadd.f32 %v548, %v692
    %v694 = vpop.f32.mrb[0].mxu0
    %695 = vmatprep.mubr.f32.mxu0 0.0
    %696 = vmatmul.mubr.f32.gmra.mrb[0].mxu0 %v402
    %v697 = vpop.f32.mrb[0].mxu0
    %v698 = vadd.f32 %v553, %v697
    %v699 = vpop.f32.mrb[0].mxu0
    %700 = vmatprep.mubr.f32.mxu0 0.0
    %701 = vmatmul.mubr.f32.gmra.mrb[0].mxu0 %v403
    %v702 = vpop.f32.mrb[0].mxu0
    %v703 = vadd.f32 %v558, %v702
    %v704 = vpop.f32.mrb[0].mxu0
    %705 = vmatprep.mubr.f32.mxu0 0.0
    %706 = vmatmul.mubr.f32.gmra.mrb[0].mxu0 %v404
    %v707 = vpop.f32.mrb[0].mxu0
    %v708 = vadd.f32 %v563, %v707
    %v709 = vpop.f32.mrb[0].mxu0
    %710 = vmatprep.mubr.f32.mxu0 0.0
    %711 = vmatmul.mubr.f32.gmra.mrb[0].mxu0 %v405
    %v712 = vpop.f32.mrb[0].mxu0
    %v713 = vadd.f32 %v568, %v712
    %v714 = vpop.f32.mrb[0].mxu0
    %715 = vmatprep.mubr.f32.mxu0 0.0
    %716 = vmatmul.mubr.f32.gmra.mrb[0].mxu0 %v406
    %v717 = vpop.f32.mrb[0].mxu0
    %v718 = vadd.f32 %v573, %v717
    %v719 = vpop.f32.mrb[0].mxu0
    %720 = vmatprep.mubr.f32.mxu0 0.0
    %721 = vmatmul.mubr.f32.gmra.mrb[0].mxu0 %v407
    %v722 = vpop.f32.mrb[0].mxu0
    %v723 = vadd.f32 %v578, %v722
    %v724 = vpop.f32.mrb[0].mxu0
    %725 = vmatprep.mubr.f32.mxu0 0.0
    %726 = vmatmul.mubr.f32.gmra.mrb[0].mxu0 %v408
    %v727 = vpop.f32.mrb[0].mxu0
    %v728 = vadd.f32 %v583, %v727
    %v729 = vpop.f32.mrb[0].mxu0
    %730 = vmatprep.mubr.f32.mxu0 0.0
    %731 = vmatmul.mubr.f32.gmra.mrb[0].mxu0 %v409
    %v732 = vpop.f32.mrb[0].mxu0
    %v733 = vadd.f32 %v588, %v732
    %v734 = vpop.f32.mrb[0].mxu0
    %735 = vmatprep.mubr.f32.mxu0 0.0
    %736 = vmatmul.mubr.f32.gmra.mrb[0].mxu0 %v410
    %v737 = vpop.f32.mrb[0].mxu0
    %v738 = vadd.f32 %v593, %v737
    %v739 = vpop.f32.mrb[0].mxu0
    %740 = vmatprep.mubr.f32.mxu0 0.0
    %741 = vmatmul.mubr.f32.gmra.mrb[0].mxu0 %v411
    %v742 = vpop.f32.mrb[0].mxu0
    %v743 = vadd.f32 %v598, %v742
    %v744 = vpop.f32.mrb[0].mxu0
    %745 = vmatprep.mubr.f32.mxu0 0.0
    %746 = vmatmul.mubr.f32.gmra.mrb[0].mxu0 %v412
    %v747 = vpop.f32.mrb[0].mxu0
    %v748 = vadd.f32 %v603, %v747
    %v749 = vpop.f32.mrb[0].mxu0
    %750 = vdwg.mxu0
    %v751 = vld [vmem:[%s4] sm:$0x1]
    %v753 = vlaneseq
    %v754 = vshrl.u32 %v753, 7
    %v755 = vsub.s32 0, %v754
    %v756 = vrot.slane %v751, %v755
    %v758 = vadd.f32 %v673, %v756
    %v759 = vadd.f32 %v678, %v756
    %v760 = vadd.f32 %v683, %v756
    %v761 = vadd.f32 %v688, %v756
    %v762 = vadd.f32 %v693, %v756
    %v763 = vadd.f32 %v698, %v756
    %v764 = vadd.f32 %v703, %v756
    %v765 = vadd.f32 %v708, %v756
    %v766 = vadd.f32 %v713, %v756
    %v767 = vadd.f32 %v718, %v756
    %v768 = vadd.f32 %v723, %v756
    %v769 = vadd.f32 %v728, %v756
    %v770 = vadd.f32 %v733, %v756
    %v771 = vadd.f32 %v738, %v756
    %v772 = vadd.f32 %v743, %v756
    %v773 = vadd.f32 %v748, %v756
    %774 = vst [vmem:[#allocation10] sm:$0xff] %v758
    %775 = vst [vmem:[#allocation10 + $0x8] sm:$0xff] %v759
    %776 = vst [vmem:[#allocation10 + $0x10] sm:$0xff] %v760
    %777 = vst [vmem:[#allocation10 + $0x18] sm:$0xff] %v761
    %778 = vst [vmem:[#allocation10 + $0x20] sm:$0xff] %v762
    %779 = vst [vmem:[#allocation10 + $0x28] sm:$0xff] %v763
    %780 = vst [vmem:[#allocation10 + $0x30] sm:$0xff] %v764
    %781 = vst [vmem:[#allocation10 + $0x38] sm:$0xff] %v765
    %782 = vst [vmem:[#allocation10 + $0x40] sm:$0xff] %v766
    %783 = vst [vmem:[#allocation10 + $0x48] sm:$0xff] %v767
    %784 = vst [vmem:[#allocation10 + $0x50] sm:$0xff] %v768
    %785 = vst [vmem:[#allocation10 + $0x58] sm:$0xff] %v769
    %786 = vst [vmem:[#allocation10 + $0x60] sm:$0xff] %v770
    %787 = vst [vmem:[#allocation10 + $0x68] sm:$0xff] %v771
    %788 = vst [vmem:[#allocation10 + $0x70] sm:$0xff] %v772
    %789 = vst [vmem:[#allocation10 + $0x78] sm:$0xff] %v773
    // Predicated region
    $region38: #{tpu_custom_call.1} parent=1 // pred_check
      _
    $region39: #{tpu_custom_call.1} parent=1 // pred_check_branch
      %791 = sbr.rel (0) target = $region41
    $region40: #{tpu_custom_call.1} parent=1 // pred_region
      %s793 = ssub.s32 2048, 2048
      %794 = vsyncadd [#allocation4], %s793
      %s795 = sshll.u32 [#allocation10], 4
      %s796 = int_to_ptr.vmem [resolvable:$true] %s795
      %801 = dma.vmem_to_hbm [thread:$0]  %s796, 2048, %s5, [#allocation4], 128, 128, 8
    $region41: #{tpu_custom_call.1} parent=1 // pred_fallthru
      _
    // Predicated region
    $region42: #{tpu_custom_call.1} parent=1 // pred_check
      _
    $region43: #{tpu_custom_call.1} parent=1 // pred_check_branch
      %803 = sbr.rel (0) target = $region45
    $region44: #{tpu_custom_call.1} parent=1 // pred_region
      %804 = dma.done [#allocation4], 2048
    $region45: #{tpu_custom_call.1} parent=1 // pred_fallthru
      _
    %805 = vsyncpa [#allocation3], 1
    %806 = vsyncpa [#allocation6], 1
    %807 = vsyncpa [#allocation9], 1
    %808 = vsyncpa [#allocation4], 1

</llo_original>
